<compile_context>
chip_gen: v6e
topology: v6e:2x2x1
jax: 0.10.0
libtpu: 0.0.40
codegen_flags: <defaults>
</compile_context>

<pallas_src>
import functools

import jax
import jax.numpy as jnp
from jax.experimental import pallas as pl
from jax.experimental.pallas import tpu as pltpu

HIDDEN = 64
OUT_DIM = 1


def _deepset_kernel(x_ref,
                    w1s_ref, b1_ref,
                    w2_ref, b2_ref, w3_ref, b3_ref, w4_ref, b4_ref,
                    wd1_ref, bd1_ref, wd2_ref, bd2_ref,
                    out_ref, acc_ref, *, tb, chunk_groups, pack):
    lanes = pack * HIDDEN
    j = pl.program_id(1)
    cdt = w2_ref.dtype            # matmul operand dtype (f32 default, bf16 optional)

    @pl.when(j == 0)
    def _():
        acc_ref[...] = jnp.full_like(acc_ref, -jnp.inf)

    rows = chunk_groups * tb
    x2 = x_ref[...].reshape(rows, pack)         # tile-aligned (tb % 8 == 0)

    # Linear(1 -> 64), replicated into `pack` lane slots.  Pure VPU broadcasts
    # (keeps the MXU for the 64x64 layers).
    h = x2[:, 0:1] * w1s_ref[0:1, :]
    for k in range(1, pack):
        h = h + x2[:, k:k + 1] * w1s_ref[k:k + 1, :]
    h = jnp.maximum(h + b1_ref[...], 0.0)

    # 64x64 encoder layers as block-diagonal (lanes x lanes) matmuls, f32 acc.
    h = jnp.maximum(
        jnp.dot(h.astype(cdt), w2_ref[...], preferred_element_type=jnp.float32)
        + b2_ref[...], 0.0)
    h = jnp.maximum(
        jnp.dot(h.astype(cdt), w3_ref[...], preferred_element_type=jnp.float32)
        + b3_ref[...], 0.0)
    h = jnp.dot(h.astype(cdt), w4_ref[...], preferred_element_type=jnp.float32)
    # b4 is hoisted past the max pool (per-lane constant across set elements);
    # no ReLU after the last encoder Linear (matches the PyTorch module).

    # Running max over this chunk of set elements.  Set-major layout + tb % 8
    # == 0 make this a pure whole-vreg vmax (no XLU shuffles, no retile copy).
    chunk_max = h.reshape(chunk_groups, tb, lanes).max(axis=0)
    acc_ref[...] = jnp.maximum(acc_ref[...], chunk_max)

    @pl.when(j == pl.num_programs(1) - 1)
    def _():
        pooled = acc_ref[...]                       # (tb, pack*64)
        shift = lanes // 2
        while shift >= HIDDEN:                      # butterfly max over lane slots
            pooled = jnp.maximum(pooled, pltpu.roll(pooled, shift=shift, axis=1))
            shift //= 2
        pooled = pooled[:, :HIDDEN] + b4_ref[...]   # hoisted encoder bias

        d = jnp.maximum(
            jnp.dot(pooled, wd1_ref[...], preferred_element_type=jnp.float32)
            + bd1_ref[...], 0.0)
        out = jnp.dot(d, wd2_ref[...], preferred_element_type=jnp.float32) + bd2_ref[...]
        out_ref[...] = out.astype(out_ref.dtype)    # (tb, pack*64) lane-dense


def _pack_params(params, pack, matmul_dtype):
    """One-time layout transform: slot/block-diagonal packed weights."""
    (w1, b1, w2, b2, w3, b3, w4, b4, wd1, bd1, wd2, bd2) = params
    eye = jnp.eye(pack, dtype=w2.dtype)
    block_diag = lambda w: jnp.kron(eye, w)        # (64,64) -> (pack*64, pack*64)
    tile_bias = lambda b: jnp.tile(b, (1, pack))   # (1,64)  -> (1, pack*64)

    w1s = jnp.kron(eye, w1)                        # (pack, pack*64): w1 in slot k
    w2p = block_diag(w2).astype(matmul_dtype)
    w3p = block_diag(w3).astype(matmul_dtype)
    w4p = block_diag(w4).astype(matmul_dtype)
    b1p, b2p, b3p = tile_bias(b1), tile_bias(b2), tile_bias(b3)

    lanes = pack * HIDDEN
    # Lane-dense output: zero-pad Linear(64 -> 1) to pack*64 output columns.
    wd2p = jnp.pad(wd2, ((0, 0), (0, lanes - wd2.shape[1])))
    bd2p = jnp.pad(bd2, ((0, 0), (0, lanes - bd2.shape[1])))
    # b4 stays (1, 64): it is added after pooling (hoisted).
    return (w1s, b1p, w2p, b2p, w3p, b3p, w4p, b4, wd1, bd1, wd2p, bd2p)


def _default_pack():
    """4 lane slots (256-wide matmuls) on 256x256-MXU generations (v6e/v7x);
    2 slots (128-wide) on 128x128-MXU generations (v5e and older)."""
    try:
        kind = jax.devices()[0].device_kind.lower()
    except Exception:
        return 2
    if "v6" in kind or "v7" in kind or "7x" in kind:
        return 4
    return 2


def _round_up(x, m):
    return -(-x // m) * m


def _choose_tiles(batch, groups, lanes):
    """Pick (batch_tile, padded_batch, chunk_groups, padded_groups).

    - batch_tile: multiple of 8 (sublane tiling), small enough to give >= 2
      (usually >= 4) steps on the parallel batch axis when B >= 16 (keeps both
      v7x TensorCores busy + pipeline overlapped), capped so one grid step's
      activations stay ~2 MiB per live (rows, lanes) f32 temporary.
    - the set dimension is chunked on a second 'arbitrary' grid axis, so VMEM
      use is independent of N (running-max accumulator in scratch).
    - batch / groups are padded up to tile multiples (no tb=B fallback).
    """
    rows_target = max(256, (1 << 19) // lanes)     # 4096 rows @128 lanes, 2048 @256

    if batch <= 8:
        tb = 8
    elif batch <= 16:
        tb = _round_up(_round_up(batch, 2) // 2, 8)
    else:
        tb = _round_up(_round_up(batch, 4) // 4, 8)
    tb = min(tb, rows_target)
    b_pad = _round_up(batch, tb)

    chunk_groups = max(1, min(groups, rows_target // tb))
    groups_pad = _round_up(groups, chunk_groups)
    return tb, b_pad, chunk_groups, groups_pad


def small_deepset_forward(x, params, *, matmul_dtype=jnp.float32, pack=None):
    """x: (B, N, 1) float32.  Returns (B, 1) float32 (max pool over dim=1).

    matmul_dtype=jnp.bfloat16 gives ~3x MXU throughput on v6e/v7x (f32
    accumulation) at ~1e-3..1e-2 relative error; the default keeps f32 to
    match the PyTorch module bit-for-bit within 1e-4.
    """
    B, N, one = x.shape
    assert one == 1
    if pack is None:
        pack = _default_pack()
    lanes = pack * HIDDEN

    # Pad the set to a multiple of `pack` by repeating the last element
    # (max pooling is idempotent under duplication).
    rem = (-N) % pack
    if rem:
        x = jnp.concatenate([x, jnp.repeat(x[:, -1:, :], rem, axis=1)], axis=1)
    groups = (N + rem) // pack

    tb, b_pad, chunk_groups, groups_pad = _choose_tiles(B, groups, lanes)
    num_chunks = groups_pad // chunk_groups
    grid_b = b_pad // tb

    # Single merged, set-major / batch-minor input: (groups, B, pack).
    # Edge padding duplicates the last group / batch row (harmless under max;
    # padded batch rows are sliced off afterwards).
    xg = jnp.transpose(x.reshape(B, groups, pack), (1, 0, 2))
    xg = jnp.pad(xg, ((0, groups_pad - groups), (0, b_pad - B), (0, 0)), mode="edge")

    packed = _pack_params(params, pack, matmul_dtype)

    def resident(a):
        # Constant index_map -> weights stay resident in VMEM across the grid.
        # TODO(synk): pipeline_mode=pl.Buffered(1) would drop the redundant
        # double-buffer on these constant blocks (minor VMEM headroom).
        nd = a.ndim
        return pl.BlockSpec(a.shape, lambda i, j, _nd=nd: (0,) * _nd)

    in_specs = [pl.BlockSpec((chunk_groups, tb, pack), lambda i, j: (j, i, 0))]
    in_specs += [resident(a) for a in packed]

    kernel = functools.partial(_deepset_kernel, tb=tb,
                               chunk_groups=chunk_groups, pack=pack)

    out_padded = pl.pallas_call(
        kernel,
        out_shape=jax.ShapeDtypeStruct((b_pad, lanes), jnp.float32),
        grid_spec=pltpu.PrefetchScalarGridSpec(
            num_scalar_prefetch=0,
            grid=(grid_b, num_chunks),
            in_specs=in_specs,
            out_specs=pl.BlockSpec((tb, lanes), lambda i, j: (i, 0)),
            scratch_shapes=[pltpu.VMEM((tb, lanes), jnp.float32)],
        ),
        compiler_params=pltpu.CompilerParams(
            dimension_semantics=("parallel", "arbitrary"),
            vmem_limit_bytes=32 * 1024 * 1024,
        ),
    )(xg, *packed)

    return out_padded[:B, :OUT_DIM]


def init_params(key):
    """Deterministic init mimicking torch.nn.Linear (uniform +-1/sqrt(fan_in)).
    Weights stored as (in, out); biases as (1, out)."""
    def linear(k, fan_in, fan_out):
        kw, kb = jax.random.split(k)
        bound = 1.0 / jnp.sqrt(jnp.float32(fan_in))
        w = jax.random.uniform(kw, (fan_in, fan_out), jnp.float32, -bound, bound)
        b = jax.random.uniform(kb, (1, fan_out), jnp.float32, -bound, bound)
        return w, b

    keys = jax.random.split(key, 6)
    w1, b1 = linear(keys[0], 1, HIDDEN)
    w2, b2 = linear(keys[1], HIDDEN, HIDDEN)
    w3, b3 = linear(keys[2], HIDDEN, HIDDEN)
    w4, b4 = linear(keys[3], HIDDEN, HIDDEN)
    wd1, bd1 = linear(keys[4], HIDDEN, HIDDEN)
    wd2, bd2 = linear(keys[5], HIDDEN, OUT_DIM)
    return (w1, b1, w2, b2, w3, b3, w4, b4, wd1, bd1, wd2, bd2)


def reference_forward(x, params):
    (w1, b1, w2, b2, w3, b3, w4, b4, wd1, bd1, wd2, bd2) = params
    h = jnp.maximum(x @ w1 + b1, 0.0)
    h = jnp.maximum(h @ w2 + b2, 0.0)
    h = jnp.maximum(h @ w3 + b3, 0.0)
    h = h @ w4 + b4
    pooled = h.max(axis=1)
    d = jnp.maximum(pooled @ wd1 + bd1, 0.0)
    return d @ wd2 + bd2


if __name__ == "__main__":
    key = jax.random.PRNGKey(0)
    k_x, k_p = jax.random.split(key)

    B, N = 2, 8                      # batch of 2 sets, 8 elements each
    x = jax.random.normal(k_x, (B, N, 1), jnp.float32)
    params = init_params(k_p)

    out = jax.block_until_ready(small_deepset_forward(x, params))
    ref = reference_forward(x, params)

    assert out.shape == (B, OUT_DIM), out.shape
    assert jnp.allclose(out, ref, atol=1e-4, rtol=1e-4), (out, ref)

    print("KERNEL_OK")
</pallas_src>

<mosaic_0001>
module attributes {stable_mosaic.version = 11 : i64} {
  func.func @_deepset_kernel(%arg0: i32, %arg1: i32, %arg2: memref<4x8x2xf32, #tpu.memory_space<vmem>>, %arg3: memref<2x128xf32, #tpu.memory_space<vmem>>, %arg4: memref<1x128xf32, #tpu.memory_space<vmem>>, %arg5: memref<128x128xf32, #tpu.memory_space<vmem>>, %arg6: memref<1x128xf32, #tpu.memory_space<vmem>>, %arg7: memref<128x128xf32, #tpu.memory_space<vmem>>, %arg8: memref<1x128xf32, #tpu.memory_space<vmem>>, %arg9: memref<128x128xf32, #tpu.memory_space<vmem>>, %arg10: memref<1x64xf32, #tpu.memory_space<vmem>>, %arg11: memref<64x64xf32, #tpu.memory_space<vmem>>, %arg12: memref<1x64xf32, #tpu.memory_space<vmem>>, %arg13: memref<64x128xf32, #tpu.memory_space<vmem>>, %arg14: memref<1x128xf32, #tpu.memory_space<vmem>>, %arg15: memref<8x128xf32, #tpu.memory_space<vmem>>, %arg16: memref<8x128xf32, #tpu.memory_space<vmem>>) attributes {dimension_semantics = [#tpu.dimension_semantics<parallel>, #tpu.dimension_semantics<arbitrary>], iteration_bounds = array<i64: 1, 1>, scalar_prefetch = 0 : i64, scratch_operands = 1 : i64, tpu.core_type = #tpu.core_type<tc>, window_params = [{transform_indices = @transform_0, window_bounds = array<i64: 4, 8, 2>}, {pipeline_mode = #tpu.pipeline_mode<synchronous>, transform_indices = @transform_1, window_bounds = array<i64: 2, 128>}, {pipeline_mode = #tpu.pipeline_mode<synchronous>, transform_indices = @transform_2, window_bounds = array<i64: 1, 128>}, {pipeline_mode = #tpu.pipeline_mode<synchronous>, transform_indices = @transform_3, window_bounds = array<i64: 128, 128>}, {pipeline_mode = #tpu.pipeline_mode<synchronous>, transform_indices = @transform_4, window_bounds = array<i64: 1, 128>}, {pipeline_mode = #tpu.pipeline_mode<synchronous>, transform_indices = @transform_5, window_bounds = array<i64: 128, 128>}, {pipeline_mode = #tpu.pipeline_mode<synchronous>, transform_indices = @transform_6, window_bounds = array<i64: 1, 128>}, {pipeline_mode = #tpu.pipeline_mode<synchronous>, transform_indices = @transform_7, window_bounds = array<i64: 128, 128>}, {pipeline_mode = #tpu.pipeline_mode<synchronous>, transform_indices = @transform_8, window_bounds = array<i64: 1, 64>}, {pipeline_mode = #tpu.pipeline_mode<synchronous>, transform_indices = @transform_9, window_bounds = array<i64: 64, 64>}, {pipeline_mode = #tpu.pipeline_mode<synchronous>, transform_indices = @transform_10, window_bounds = array<i64: 1, 64>}, {pipeline_mode = #tpu.pipeline_mode<synchronous>, transform_indices = @transform_11, window_bounds = array<i64: 64, 128>}, {pipeline_mode = #tpu.pipeline_mode<synchronous>, transform_indices = @transform_12, window_bounds = array<i64: 1, 128>}, {transform_indices = @transform_13, window_bounds = array<i64: 8, 128>}]} {
    %c0_i32 = arith.constant 0 : i32
    %0 = arith.cmpi eq, %arg1, %c0_i32 : i32
    %1 = arith.extui %0 : i1 to i32
    %c0_i32_0 = arith.constant 0 : i32
    %2 = arith.cmpi ne, %1, %c0_i32_0 : i32
    scf.if %2 {
      %cst_30 = arith.constant 0xFF800000 : f32
      %45 = vector.broadcast %cst_30 : f32 to vector<8x128xf32>
      %c0_31 = arith.constant 0 : index
      %c0_32 = arith.constant 0 : index
      %46 = vector.load %arg16[%c0_31, %c0_32] : memref<8x128xf32, #tpu.memory_space<vmem>>, vector<8x128xf32>
      tpu.vector_store %arg16[%c0_31, %c0_32], %45 {strides = array<i32>} : memref<8x128xf32, #tpu.memory_space<vmem>>, vector<8x128xf32>,
    } else {
    }
    %c0 = arith.constant 0 : index
    %c0_1 = arith.constant 0 : index
    %c0_2 = arith.constant 0 : index
    %3 = vector.load %arg2[%c0, %c0_1, %c0_2] : memref<4x8x2xf32, #tpu.memory_space<vmem>>, vector<4x8x2xf32>
    %4 = vector.shape_cast %3 : vector<4x8x2xf32> to vector<32x2xf32>
    %5 = vector.extract_strided_slice %4 {offsets = [0, 0], sizes = [32, 1], strides = [1, 1]} : vector<32x2xf32> to vector<32x1xf32>
    %c0_3 = arith.constant 0 : index
    %c0_4 = arith.constant 0 : index
    %6 = vector.load %arg3[%c0_3, %c0_4] : memref<2x128xf32, #tpu.memory_space<vmem>>, vector<1x128xf32>
    %7 = vector.broadcast %5 : vector<32x1xf32> to vector<32x128xf32>
    %8 = vector.broadcast %6 : vector<1x128xf32> to vector<32x128xf32>
    %9 = arith.mulf %7, %8 : vector<32x128xf32>
    %10 = vector.extract_strided_slice %4 {offsets = [0, 1], sizes = [32, 1], strides = [1, 1]} : vector<32x2xf32> to vector<32x1xf32>
    %c1 = arith.constant 1 : index
    %c0_5 = arith.constant 0 : index
    %11 = vector.load %arg3[%c1, %c0_5] : memref<2x128xf32, #tpu.memory_space<vmem>>, vector<1x128xf32>
    %12 = vector.broadcast %10 : vector<32x1xf32> to vector<32x128xf32>
    %13 = vector.broadcast %11 : vector<1x128xf32> to vector<32x128xf32>
    %14 = arith.mulf %12, %13 : vector<32x128xf32>
    %15 = arith.addf %9, %14 : vector<32x128xf32>
    %c0_6 = arith.constant 0 : index
    %c0_7 = arith.constant 0 : index
    %16 = vector.load %arg4[%c0_6, %c0_7] : memref<1x128xf32, #tpu.memory_space<vmem>>, vector<1x128xf32>
    %17 = vector.broadcast %16 : vector<1x128xf32> to vector<32x128xf32>
    %18 = arith.addf %15, %17 : vector<32x128xf32>
    %cst = arith.constant 0.000000e+00 : f32
    %19 = vector.broadcast %cst : f32 to vector<32x128xf32>
    %20 = arith.maximumf %18, %19 : vector<32x128xf32>
    %c0_8 = arith.constant 0 : index
    %c0_9 = arith.constant 0 : index
    %21 = vector.load %arg5[%c0_8, %c0_9] : memref<128x128xf32, #tpu.memory_space<vmem>>, vector<128x128xf32>
    %cst_10 = arith.constant dense<0.000000e+00> : vector<32x128xf32>
    %22 = tpu.matmul %20, %21, %cst_10 {dimension_numbers = #tpu.dot_dimension_numbers<[1], [0], [0], [1], [0, 0, 1, 1], [], []>} : vector<32x128xf32>, vector<128x128xf32>, vector<32x128xf32> -> vector<32x128xf32>
    %c0_11 = arith.constant 0 : index
    %c0_12 = arith.constant 0 : index
    %23 = vector.load %arg6[%c0_11, %c0_12] : memref<1x128xf32, #tpu.memory_space<vmem>>, vector<1x128xf32>
    %24 = vector.broadcast %23 : vector<1x128xf32> to vector<32x128xf32>
    %25 = arith.addf %22, %24 : vector<32x128xf32>
    %cst_13 = arith.constant 0.000000e+00 : f32
    %26 = vector.broadcast %cst_13 : f32 to vector<32x128xf32>
    %27 = arith.maximumf %25, %26 : vector<32x128xf32>
    %c0_14 = arith.constant 0 : index
    %c0_15 = arith.constant 0 : index
    %28 = vector.load %arg7[%c0_14, %c0_15] : memref<128x128xf32, #tpu.memory_space<vmem>>, vector<128x128xf32>
    %cst_16 = arith.constant dense<0.000000e+00> : vector<32x128xf32>
    %29 = tpu.matmul %27, %28, %cst_16 {dimension_numbers = #tpu.dot_dimension_numbers<[1], [0], [0], [1], [0, 0, 1, 1], [], []>} : vector<32x128xf32>, vector<128x128xf32>, vector<32x128xf32> -> vector<32x128xf32>
    %c0_17 = arith.constant 0 : index
    %c0_18 = arith.constant 0 : index
    %30 = vector.load %arg8[%c0_17, %c0_18] : memref<1x128xf32, #tpu.memory_space<vmem>>, vector<1x128xf32>
    %31 = vector.broadcast %30 : vector<1x128xf32> to vector<32x128xf32>
    %32 = arith.addf %29, %31 : vector<32x128xf32>
    %cst_19 = arith.constant 0.000000e+00 : f32
    %33 = vector.broadcast %cst_19 : f32 to vector<32x128xf32>
    %34 = arith.maximumf %32, %33 : vector<32x128xf32>
    %c0_20 = arith.constant 0 : index
    %c0_21 = arith.constant 0 : index
    %35 = vector.load %arg9[%c0_20, %c0_21] : memref<128x128xf32, #tpu.memory_space<vmem>>, vector<128x128xf32>
    %cst_22 = arith.constant dense<0.000000e+00> : vector<32x128xf32>
    %36 = tpu.matmul %34, %35, %cst_22 {dimension_numbers = #tpu.dot_dimension_numbers<[1], [0], [0], [1], [0, 0, 1, 1], [], []>} : vector<32x128xf32>, vector<128x128xf32>, vector<32x128xf32> -> vector<32x128xf32>
    %37 = vector.shape_cast %36 : vector<32x128xf32> to vector<4x8x128xf32>
    %cst_23 = arith.constant dense<0xFF800000> : vector<8x128xf32>
    %38 = vector.multi_reduction <maximumf>, %37, %cst_23 [0] : vector<4x8x128xf32> to vector<8x128xf32>
    %c0_24 = arith.constant 0 : index
    %c0_25 = arith.constant 0 : index
    %39 = vector.load %arg16[%c0_24, %c0_25] : memref<8x128xf32, #tpu.memory_space<vmem>>, vector<8x128xf32>
    %40 = arith.maximumf %39, %38 : vector<8x128xf32>
    %c0_26 = arith.constant 0 : index
    %c0_27 = arith.constant 0 : index
    %41 = vector.load %arg16[%c0_26, %c0_27] : memref<8x128xf32, #tpu.memory_space<vmem>>, vector<8x128xf32>
    tpu.vector_store %arg16[%c0_26, %c0_27], %40 {strides = array<i32>} : memref<8x128xf32, #tpu.memory_space<vmem>>, vector<8x128xf32>,
    %c0_i32_28 = arith.constant 0 : i32
    %42 = arith.cmpi eq, %arg1, %c0_i32_28 : i32
    %43 = arith.extui %42 : i1 to i32
    %c0_i32_29 = arith.constant 0 : i32
    %44 = arith.cmpi ne, %43, %c0_i32_29 : i32
    scf.if %44 {
      %c0_30 = arith.constant 0 : index
      %c0_31 = arith.constant 0 : index
      %45 = vector.load %arg16[%c0_30, %c0_31] : memref<8x128xf32, #tpu.memory_space<vmem>>, vector<8x128xf32>
      %c64_i32 = arith.constant 64 : i32
      %46 = tpu.dynamic_rotate %45 by %c64_i32 dim 1 : vector<8x128xf32>, i32 -> vector<8x128xf32>
      %47 = arith.maximumf %45, %46 : vector<8x128xf32>
      %48 = vector.extract_strided_slice %47 {offsets = [0, 0], sizes = [8, 64], strides = [1, 1]} : vector<8x128xf32> to vector<8x64xf32>
      %c0_32 = arith.constant 0 : index
      %c0_33 = arith.constant 0 : index
      %49 = vector.load %arg10[%c0_32, %c0_33] : memref<1x64xf32, #tpu.memory_space<vmem>>, vector<1x64xf32>
      %50 = vector.broadcast %49 : vector<1x64xf32> to vector<8x64xf32>
      %51 = arith.addf %48, %50 : vector<8x64xf32>
      %c0_34 = arith.constant 0 : index
      %c0_35 = arith.constant 0 : index
      %52 = vector.load %arg11[%c0_34, %c0_35] : memref<64x64xf32, #tpu.memory_space<vmem>>, vector<64x64xf32>
      %cst_36 = arith.constant dense<0.000000e+00> : vector<8x64xf32>
      %53 = tpu.matmul %51, %52, %cst_36 {dimension_numbers = #tpu.dot_dimension_numbers<[1], [0], [0], [1], [0, 0, 1, 1], [], []>} : vector<8x64xf32>, vector<64x64xf32>, vector<8x64xf32> -> vector<8x64xf32>
      %c0_37 = arith.constant 0 : index
      %c0_38 = arith.constant 0 : index
      %54 = vector.load %arg12[%c0_37, %c0_38] : memref<1x64xf32, #tpu.memory_space<vmem>>, vector<1x64xf32>
      %55 = vector.broadcast %54 : vector<1x64xf32> to vector<8x64xf32>
      %56 = arith.addf %53, %55 : vector<8x64xf32>
      %cst_39 = arith.constant 0.000000e+00 : f32
      %57 = vector.broadcast %cst_39 : f32 to vector<8x64xf32>
      %58 = arith.maximumf %56, %57 : vector<8x64xf32>
      %c0_40 = arith.constant 0 : index
      %c0_41 = arith.constant 0 : index
      %59 = vector.load %arg13[%c0_40, %c0_41] : memref<64x128xf32, #tpu.memory_space<vmem>>, vector<64x128xf32>
      %cst_42 = arith.constant dense<0.000000e+00> : vector<8x128xf32>
      %60 = tpu.matmul %58, %59, %cst_42 {dimension_numbers = #tpu.dot_dimension_numbers<[1], [0], [0], [1], [0, 0, 1, 1], [], []>} : vector<8x64xf32>, vector<64x128xf32>, vector<8x128xf32> -> vector<8x128xf32>
      %c0_43 = arith.constant 0 : index
      %c0_44 = arith.constant 0 : index
      %61 = vector.load %arg14[%c0_43, %c0_44] : memref<1x128xf32, #tpu.memory_space<vmem>>, vector<1x128xf32>
      %62 = vector.broadcast %61 : vector<1x128xf32> to vector<8x128xf32>
      %63 = arith.addf %60, %62 : vector<8x128xf32>
      %c0_45 = arith.constant 0 : index
      %c0_46 = arith.constant 0 : index
      %64 = vector.load %arg15[%c0_45, %c0_46] : memref<8x128xf32, #tpu.memory_space<vmem>>, vector<8x128xf32>
      tpu.vector_store %arg15[%c0_45, %c0_46], %63 {strides = array<i32>} : memref<8x128xf32, #tpu.memory_space<vmem>>, vector<8x128xf32>,
    } else {
    }
    return
  }
  func.func @transform_0(%arg0: i32, %arg1: i32) -> (i32, i32, i32) {
    %c0_i32 = arith.constant 0 : i32
    %c0_i32_0 = arith.constant 0 : i32
    return %arg1, %arg0, %c0_i32 : i32, i32, i32
  }
  func.func @transform_1(%arg0: i32, %arg1: i32) -> (i32, i32) {
    %c0_i32 = arith.constant 0 : i32
    %c0_i32_0 = arith.constant 0 : i32
    %c0_i32_1 = arith.constant 0 : i32
    return %c0_i32, %c0_i32_0 : i32, i32
  }
  func.func @transform_2(%arg0: i32, %arg1: i32) -> (i32, i32) {
    %c0_i32 = arith.constant 0 : i32
    %c0_i32_0 = arith.constant 0 : i32
    %c0_i32_1 = arith.constant 0 : i32
    return %c0_i32, %c0_i32_0 : i32, i32
  }
  func.func @transform_3(%arg0: i32, %arg1: i32) -> (i32, i32) {
    %c0_i32 = arith.constant 0 : i32
    %c0_i32_0 = arith.constant 0 : i32
    %c0_i32_1 = arith.constant 0 : i32
    return %c0_i32, %c0_i32_0 : i32, i32
  }
  func.func @transform_4(%arg0: i32, %arg1: i32) -> (i32, i32) {
    %c0_i32 = arith.constant 0 : i32
    %c0_i32_0 = arith.constant 0 : i32
    %c0_i32_1 = arith.constant 0 : i32
    return %c0_i32, %c0_i32_0 : i32, i32
  }
  func.func @transform_5(%arg0: i32, %arg1: i32) -> (i32, i32) {
    %c0_i32 = arith.constant 0 : i32
    %c0_i32_0 = arith.constant 0 : i32
    %c0_i32_1 = arith.constant 0 : i32
    return %c0_i32, %c0_i32_0 : i32, i32
  }
  func.func @transform_6(%arg0: i32, %arg1: i32) -> (i32, i32) {
    %c0_i32 = arith.constant 0 : i32
    %c0_i32_0 = arith.constant 0 : i32
    %c0_i32_1 = arith.constant 0 : i32
    return %c0_i32, %c0_i32_0 : i32, i32
  }
  func.func @transform_7(%arg0: i32, %arg1: i32) -> (i32, i32) {
    %c0_i32 = arith.constant 0 : i32
    %c0_i32_0 = arith.constant 0 : i32
    %c0_i32_1 = arith.constant 0 : i32
    return %c0_i32, %c0_i32_0 : i32, i32
  }
  func.func @transform_8(%arg0: i32, %arg1: i32) -> (i32, i32) {
    %c0_i32 = arith.constant 0 : i32
    %c0_i32_0 = arith.constant 0 : i32
    %c0_i32_1 = arith.constant 0 : i32
    return %c0_i32, %c0_i32_0 : i32, i32
  }
  func.func @transform_9(%arg0: i32, %arg1: i32) -> (i32, i32) {
    %c0_i32 = arith.constant 0 : i32
    %c0_i32_0 = arith.constant 0 : i32
    %c0_i32_1 = arith.constant 0 : i32
    return %c0_i32, %c0_i32_0 : i32, i32
  }
  func.func @transform_10(%arg0: i32, %arg1: i32) -> (i32, i32) {
    %c0_i32 = arith.constant 0 : i32
    %c0_i32_0 = arith.constant 0 : i32
    %c0_i32_1 = arith.constant 0 : i32
    return %c0_i32, %c0_i32_0 : i32, i32
  }
  func.func @transform_11(%arg0: i32, %arg1: i32) -> (i32, i32) {
    %c0_i32 = arith.constant 0 : i32
    %c0_i32_0 = arith.constant 0 : i32
    %c0_i32_1 = arith.constant 0 : i32
    return %c0_i32, %c0_i32_0 : i32, i32
  }
  func.func @transform_12(%arg0: i32, %arg1: i32) -> (i32, i32) {
    %c0_i32 = arith.constant 0 : i32
    %c0_i32_0 = arith.constant 0 : i32
    %c0_i32_1 = arith.constant 0 : i32
    return %c0_i32, %c0_i32_0 : i32, i32
  }
  func.func @transform_13(%arg0: i32, %arg1: i32) -> (i32, i32) {
    %c0_i32 = arith.constant 0 : i32
    %c0_i32_0 = arith.constant 0 : i32
    return %arg0, %c0_i32 : i32, i32
  }
}

</mosaic_0001>

<llo_original>
// kernel: tpu_custom_call.1
$region0: #{tpu_custom_call.1}
  #allocation0 [shape = 'u32[]', space=smem, size = 0x4, offset = 0x4, fixed_abs, tag = 'smem constant byte address 0x4 - core index']
  #allocation1 [shape = 'u32[144,128]{1,0:T(1,128)}', space=vmem, size = 0x12000, scoped, tag = 'internal scratch']
  #allocation2 [shape = 'f32[8,128]{1,0:T(8,128)}', space=vmem, size = 0x1000, scoped, tag = 'scratch operand']
  %s0 = inlined_call_operand.vmem [shape: f32[4,8,2], index: 0, kind: input, shape index: {}]
  %s1 = inlined_call_operand.vmem [shape: f32[2,128], index: 1, kind: input, shape index: {}]
  %s2 = inlined_call_operand.vmem [shape: f32[1,128], index: 2, kind: input, shape index: {}]
  %s3 = inlined_call_operand.hbm [shape: f32[128,128], index: 3, kind: input, shape index: {}]
  %s4 = inlined_call_operand.vmem [shape: f32[1,128], index: 4, kind: input, shape index: {}]
  %s5 = inlined_call_operand.hbm [shape: f32[128,128], index: 5, kind: input, shape index: {}]
  %s6 = inlined_call_operand.vmem [shape: f32[1,128], index: 6, kind: input, shape index: {}]
  %s7 = inlined_call_operand.hbm [shape: f32[128,128], index: 7, kind: input, shape index: {}]
  %s8 = inlined_call_operand.vmem [shape: f32[1,64], index: 8, kind: input, shape index: {}]
  %s9 = inlined_call_operand.hbm [shape: f32[64,64], index: 9, kind: input, shape index: {}]
  %s10 = inlined_call_operand.vmem [shape: f32[1,64], index: 10, kind: input, shape index: {}]
  %s11 = inlined_call_operand.hbm [shape: f32[64,128], index: 11, kind: input, shape index: {}]
  %s12 = inlined_call_operand.vmem [shape: f32[1,128], index: 12, kind: input, shape index: {}]
  %s13 = inlined_call_operand.hbm [shape: f32[8,128], index: 13, kind: output, shape index: {}]
  %s14 = sld [smem:[#allocation0]]
  $region90: #{tpu_custom_call.1} parent=0
    _
  %s16 = ssub.s32 1, %s14
  %s17 = scalar_select 0, %s16, %s14
  $region1: #{tpu_custom_call.1} parent=0
    #allocation3 [shape = 'u8[65536]{0}', space=vmem, size = 0x10000, scoped, tag = 'input window, operand 3, single buffered']
    #allocation4 [shape = 's32[1]{0}', space=sflag, size = 0x4, scoped, tag = 'scoped memory for tpu_custom_call.1']
    #allocation5 [shape = 's32[1]{0}', space=sflag, size = 0x4, scoped, tag = 'scoped memory for tpu_custom_call.1']
    #allocation6 [shape = 'u8[65536]{0}', space=vmem, size = 0x10000, scoped, tag = 'input window, operand 5, single buffered']
    #allocation7 [shape = 's32[1]{0}', space=sflag, size = 0x4, scoped, tag = 'scoped memory for tpu_custom_call.1']
    #allocation8 [shape = 'u8[65536]{0}', space=vmem, size = 0x10000, scoped, tag = 'input window, operand 7, single buffered']
    #allocation9 [shape = 'u8[32768]{0}', space=vmem, size = 0x8000, scoped, tag = 'input window, operand 9, single buffered']
    #allocation10 [shape = 's32[1]{0}', space=sflag, size = 0x4, scoped, tag = 'scoped memory for tpu_custom_call.1']
    #allocation11 [shape = 'u8[32768]{0}', space=vmem, size = 0x8000, scoped, tag = 'input window, operand 11, single buffered']
    #allocation12 [shape = 'u8[4096]{0}', space=vmem, size = 0x1000, scoped, tag = 'output window, operand 0, single buffered']
    %18 = vsyncpa [#allocation4], 0
    %19 = vsyncpa [#allocation7], 0
    %20 = vsyncpa [#allocation10], 0
    %21 = vsyncpa [#allocation5], 0
    // Predicated region
    $region2: #{tpu_custom_call.1} parent=1 // pred_check
      _
    $region3: #{tpu_custom_call.1} parent=1 // pred_check_branch
      %23 = sbr.rel (0) target = $region5
    $region4: #{tpu_custom_call.1} parent=1 // pred_region
      _
    $region5: #{tpu_custom_call.1} parent=1 // pred_fallthru
      _
    // Predicated region
    $region6: #{tpu_custom_call.1} parent=1 // pred_check
      _
    $region7: #{tpu_custom_call.1} parent=1 // pred_check_branch
      %25 = sbr.rel (0) target = $region9
    $region8: #{tpu_custom_call.1} parent=1 // pred_region
      _
    $region9: #{tpu_custom_call.1} parent=1 // pred_fallthru
      _
    // Predicated region
    $region10: #{tpu_custom_call.1} parent=1 // pred_check
      _
    $region11: #{tpu_custom_call.1} parent=1 // pred_check_branch
      %27 = sbr.rel (0) target = $region13
    $region12: #{tpu_custom_call.1} parent=1 // pred_region
      _
    $region13: #{tpu_custom_call.1} parent=1 // pred_fallthru
      _
    // Predicated region
    $region14: #{tpu_custom_call.1} parent=1 // pred_check
      _
    $region15: #{tpu_custom_call.1} parent=1 // pred_check_branch
      %29 = sbr.rel (0) target = $region17
    $region16: #{tpu_custom_call.1} parent=1 // pred_region
      %s31 = ssub.s32 2048, 2048
      %32 = vsyncadd [#allocation4], %s31
      %s33 = sshll.u32 [#allocation3], 4
      %s34 = int_to_ptr.vmem [resolvable:$true] %s33
      %39 = dma.hbm_to_vmem [thread:$0]  %s3, 2048, %s34, [#allocation4], 128, 128, 8
    $region17: #{tpu_custom_call.1} parent=1 // pred_fallthru
      _
    // Predicated region
    $region18: #{tpu_custom_call.1} parent=1 // pred_check
      _
    $region19: #{tpu_custom_call.1} parent=1 // pred_check_branch
      %41 = sbr.rel (0) target = $region21
    $region20: #{tpu_custom_call.1} parent=1 // pred_region
      _
    $region21: #{tpu_custom_call.1} parent=1 // pred_fallthru
      _
    // Predicated region
    $region22: #{tpu_custom_call.1} parent=1 // pred_check
      _
    $region23: #{tpu_custom_call.1} parent=1 // pred_check_branch
      %43 = sbr.rel (0) target = $region25
    $region24: #{tpu_custom_call.1} parent=1 // pred_region
      %s45 = ssub.s32 2048, 2048
      %46 = vsyncadd [#allocation7], %s45
      %s47 = sshll.u32 [#allocation6], 4
      %s48 = int_to_ptr.vmem [resolvable:$true] %s47
      %53 = dma.hbm_to_vmem [thread:$0]  %s5, 2048, %s48, [#allocation7], 128, 128, 8
    $region25: #{tpu_custom_call.1} parent=1 // pred_fallthru
      _
    // Predicated region
    $region26: #{tpu_custom_call.1} parent=1 // pred_check
      _
    $region27: #{tpu_custom_call.1} parent=1 // pred_check_branch
      %55 = sbr.rel (0) target = $region29
    $region28: #{tpu_custom_call.1} parent=1 // pred_region
      _
    $region29: #{tpu_custom_call.1} parent=1 // pred_fallthru
      _
    // Predicated region
    $region30: #{tpu_custom_call.1} parent=1 // pred_check
      _
    $region31: #{tpu_custom_call.1} parent=1 // pred_check_branch
      %57 = sbr.rel (0) target = $region33
    $region32: #{tpu_custom_call.1} parent=1 // pred_region
      %s59 = ssub.s32 2048, 2048
      %60 = vsyncadd [#allocation7], %s59
      %s61 = sshll.u32 [#allocation8], 4
      %s62 = int_to_ptr.vmem [resolvable:$true] %s61
      %67 = dma.hbm_to_vmem [thread:$0]  %s7, 2048, %s62, [#allocation7], 128, 128, 8
    $region33: #{tpu_custom_call.1} parent=1 // pred_fallthru
      _
    // Predicated region
    $region34: #{tpu_custom_call.1} parent=1 // pred_check
      _
    $region35: #{tpu_custom_call.1} parent=1 // pred_check_branch
      %69 = sbr.rel (0) target = $region37
    $region36: #{tpu_custom_call.1} parent=1 // pred_region
      _
    $region37: #{tpu_custom_call.1} parent=1 // pred_fallthru
      _
    // Predicated region
    $region38: #{tpu_custom_call.1} parent=1 // pred_check
      _
    $region39: #{tpu_custom_call.1} parent=1 // pred_check_branch
      %71 = sbr.rel (0) target = $region41
    $region40: #{tpu_custom_call.1} parent=1 // pred_region
      %s73 = ssub.s32 1024, 1024
      %74 = vsyncadd [#allocation10], %s73
      %s75 = sshll.u32 [#allocation9], 4
      %s76 = int_to_ptr.vmem [resolvable:$true] %s75
      %81 = dma.hbm_to_vmem [thread:$0]  %s9, 1024, %s76, [#allocation10], 128, 128, 8
    $region41: #{tpu_custom_call.1} parent=1 // pred_fallthru
      _
    // Predicated region
    $region42: #{tpu_custom_call.1} parent=1 // pred_check
      _
    $region43: #{tpu_custom_call.1} parent=1 // pred_check_branch
      %83 = sbr.rel (0) target = $region45
    $region44: #{tpu_custom_call.1} parent=1 // pred_region
      _
    $region45: #{tpu_custom_call.1} parent=1 // pred_fallthru
      _
    // Predicated region
    $region46: #{tpu_custom_call.1} parent=1 // pred_check
      _
    $region47: #{tpu_custom_call.1} parent=1 // pred_check_branch
      %85 = sbr.rel (0) target = $region49
    $region48: #{tpu_custom_call.1} parent=1 // pred_region
      %s87 = ssub.s32 1024, 1024
      %88 = vsyncadd [#allocation10], %s87
      %s89 = sshll.u32 [#allocation11], 4
      %s90 = int_to_ptr.vmem [resolvable:$true] %s89
      %95 = dma.hbm_to_vmem [thread:$0]  %s11, 1024, %s90, [#allocation10], 128, 128, 8
    $region49: #{tpu_custom_call.1} parent=1 // pred_fallthru
      _
    // Predicated region
    $region50: #{tpu_custom_call.1} parent=1 // pred_check
      _
    $region51: #{tpu_custom_call.1} parent=1 // pred_check_branch
      %97 = sbr.rel (0) target = $region53
    $region52: #{tpu_custom_call.1} parent=1 // pred_region
      _
    $region53: #{tpu_custom_call.1} parent=1 // pred_fallthru
      _
    // Predicated region
    $region54: #{tpu_custom_call.1} parent=1 // pred_check
      _
    $region55: #{tpu_custom_call.1} parent=1 // pred_check_branch
      %99 = sbr.rel (0) target = $region57
    $region56: #{tpu_custom_call.1} parent=1 // pred_region
      %100 = dma.done [#allocation4], 2048
    $region57: #{tpu_custom_call.1} parent=1 // pred_fallthru
      _
    // Predicated region
    $region58: #{tpu_custom_call.1} parent=1 // pred_check
      _
    $region59: #{tpu_custom_call.1} parent=1 // pred_check_branch
      %102 = sbr.rel (0) target = $region61
    $region60: #{tpu_custom_call.1} parent=1 // pred_region
      %103 = dma.done [#allocation7], 2048
    $region61: #{tpu_custom_call.1} parent=1 // pred_fallthru
      _
    // Predicated region
    $region62: #{tpu_custom_call.1} parent=1 // pred_check
      _
    $region63: #{tpu_custom_call.1} parent=1 // pred_check_branch
      %105 = sbr.rel (0) target = $region65
    $region64: #{tpu_custom_call.1} parent=1 // pred_region
      %106 = dma.done [#allocation7], 2048
    $region65: #{tpu_custom_call.1} parent=1 // pred_fallthru
      _
    // Predicated region
    $region66: #{tpu_custom_call.1} parent=1 // pred_check
      _
    $region67: #{tpu_custom_call.1} parent=1 // pred_check_branch
      %108 = sbr.rel (0) target = $region69
    $region68: #{tpu_custom_call.1} parent=1 // pred_region
      %109 = dma.done [#allocation10], 1024
    $region69: #{tpu_custom_call.1} parent=1 // pred_fallthru
      _
    // Predicated region
    $region70: #{tpu_custom_call.1} parent=1 // pred_check
      _
    $region71: #{tpu_custom_call.1} parent=1 // pred_check_branch
      %111 = sbr.rel (0) target = $region73
    $region72: #{tpu_custom_call.1} parent=1 // pred_region
      %112 = dma.done [#allocation10], 1024
    $region73: #{tpu_custom_call.1} parent=1 // pred_fallthru
      _
    %p113 = scmp.eq.s32.totalorder 0, 0
    // Predicated region
    $region74: #{tpu_custom_call.1} parent=1 // pred_check
      %p114 = pneg %p113
    $region75: #{tpu_custom_call.1} parent=1 // pred_check_branch
      %116 = sbr.rel (%p114) target = $region77
    $region76: #{tpu_custom_call.1} parent=1 // pred_region
      %117 = vst [vmem:[#allocation2] sm:$0xff] -inf
    $region77: #{tpu_custom_call.1} parent=1 // pred_fallthru
      _
    %v118 = vld [vmem:[%s0] sm:$0xff]
    %v119 = vld [vmem:[%s0 + $0x8] sm:$0xff]
    %v120 = vld [vmem:[%s0 + $0x10] sm:$0xff]
    %v121 = vld [vmem:[%s0 + $0x18] sm:$0xff]
    %v122 = vld [vmem:[%s1] sm:$0x1]
    %124 = vset.pattern.permute.xlu0 0
    %125 = vperm.xlu0 %124, %v118
    %v126 = vpop.permute.xlu0 %125
    %129 = vset.pattern.permute.xlu0 0
    %130 = vperm.xlu0 %129, %v119
    %v131 = vpop.permute.xlu0 %130
    %134 = vset.pattern.permute.xlu0 0
    %135 = vperm.xlu0 %134, %v120
    %v136 = vpop.permute.xlu0 %135
    %139 = vset.pattern.permute.xlu0 0
    %140 = vperm.xlu0 %139, %v121
    %v141 = vpop.permute.xlu0 %140
    %v143 = vlaneseq
    %v144 = vshrl.u32 %v143, 7
    %v145 = vsub.s32 0, %v144
    %v146 = vrot.slane %v122, %v145
    %v147 = vmul.f32 %v126, %v146
    %v148 = vmul.f32 %v131, %v146
    %v149 = vmul.f32 %v136, %v146
    %v150 = vmul.f32 %v141, %v146
    %v151 = vld [vmem:[%s1 + $0x1] sm:$0x1]
    %152 = vset.pattern.permute.xlu0 1
    %153 = vperm.xlu0 %152, %v118
    %v154 = vpop.permute.xlu0 %153
    %156 = vset.pattern.permute.xlu0 1
    %157 = vperm.xlu0 %156, %v119
    %v158 = vpop.permute.xlu0 %157
    %160 = vset.pattern.permute.xlu0 1
    %161 = vperm.xlu0 %160, %v120
    %v162 = vpop.permute.xlu0 %161
    %164 = vset.pattern.permute.xlu0 1
    %165 = vperm.xlu0 %164, %v121
    %v166 = vpop.permute.xlu0 %165
    %v168 = vlaneseq
    %v169 = vshrl.u32 %v168, 7
    %v170 = vsub.s32 0, %v169
    %v171 = vrot.slane %v151, %v170
    %v172 = vmul.f32 %v154, %v171
    %v173 = vmul.f32 %v158, %v171
    %v174 = vmul.f32 %v162, %v171
    %v175 = vmul.f32 %v166, %v171
    %v176 = vadd.f32 %v147, %v172
    %v177 = vadd.f32 %v148, %v173
    %v178 = vadd.f32 %v149, %v174
    %v179 = vadd.f32 %v150, %v175
    %v180 = vld [vmem:[%s2] sm:$0x1]
    %v182 = vlaneseq
    %v183 = vshrl.u32 %v182, 7
    %v184 = vsub.s32 0, %v183
    %v185 = vrot.slane %v180, %v184
    %v187 = vadd.f32 %v176, %v185
    %v188 = vadd.f32 %v177, %v185
    %v189 = vadd.f32 %v178, %v185
    %v190 = vadd.f32 %v179, %v185
    %v191 = vmax.f32 %v187, 0.0
    %v192 = vmax.f32 %v188, 0.0
    %v193 = vmax.f32 %v189, 0.0
    %v194 = vmax.f32 %v190, 0.0
    %v195 = vld [vmem:[#allocation3] sm:$0xff]
    %v196 = vld [vmem:[#allocation3 + $0x8] sm:$0xff]
    %v197 = vld [vmem:[#allocation3 + $0x10] sm:$0xff]
    %v198 = vld [vmem:[#allocation3 + $0x18] sm:$0xff]
    %v199 = vld [vmem:[#allocation3 + $0x20] sm:$0xff]
    %v200 = vld [vmem:[#allocation3 + $0x28] sm:$0xff]
    %v201 = vld [vmem:[#allocation3 + $0x30] sm:$0xff]
    %v202 = vld [vmem:[#allocation3 + $0x38] sm:$0xff]
    %v203 = vld [vmem:[#allocation3 + $0x40] sm:$0xff]
    %v204 = vld [vmem:[#allocation3 + $0x48] sm:$0xff]
    %v205 = vld [vmem:[#allocation3 + $0x50] sm:$0xff]
    %v206 = vld [vmem:[#allocation3 + $0x58] sm:$0xff]
    %v207 = vld [vmem:[#allocation3 + $0x60] sm:$0xff]
    %v208 = vld [vmem:[#allocation3 + $0x68] sm:$0xff]
    %v209 = vld [vmem:[#allocation3 + $0x70] sm:$0xff]
    %v210 = vld [vmem:[#allocation3 + $0x78] sm:$0xff]
    %v211 = vld [vmem:[%s4] sm:$0x1]
    %v213 = vlaneseq
    %v214 = vshrl.u32 %v213, 7
    %v215 = vsub.s32 0, %v214
    %v216 = vrot.slane %v211, %v215
    %218 = vmatprep.subr.mxu0 0.0
    %219 = vmatpush1.msra.mxu0 %v210
    %220 = vmatprep.subr.mxu0 0.0
    %221 = vmatpush1.msra.mxu0 %v209
    %222 = vmatprep.subr.mxu0 0.0
    %223 = vmatpush1.msra.mxu0 %v208
    %224 = vmatprep.subr.mxu0 0.0
    %225 = vmatpush1.msra.mxu0 %v207
    %226 = vmatprep.subr.mxu0 0.0
    %227 = vmatpush1.msra.mxu0 %v206
    %228 = vmatprep.subr.mxu0 0.0
    %229 = vmatpush1.msra.mxu0 %v205
    %230 = vmatprep.subr.mxu0 0.0
    %231 = vmatpush1.msra.mxu0 %v204
    %232 = vmatprep.subr.mxu0 0.0
    %233 = vmatpush1.msra.mxu0 %v203
    %234 = vmatprep.subr.mxu0 0.0
    %235 = vmatpush1.msra.mxu0 %v202
    %236 = vmatprep.subr.mxu0 0.0
    %237 = vmatpush1.msra.mxu0 %v201
    %238 = vmatprep.subr.mxu0 0.0
    %239 = vmatpush1.msra.mxu0 %v200
    %240 = vmatprep.subr.mxu0 0.0
    %241 = vmatpush1.msra.mxu0 %v199
    %242 = vmatprep.subr.mxu0 0.0
    %243 = vmatpush1.msra.mxu0 %v198
    %244 = vmatprep.subr.mxu0 0.0
    %245 = vmatpush1.msra.mxu0 %v197
    %246 = vmatprep.subr.mxu0 0.0
    %247 = vmatpush1.msra.mxu0 %v196
    %248 = vmatprep.subr.mxu0 0.0
    %249 = vmatpush1.msra.mxu0 %v195
    %250 = vmatprep.subr.mxu0 0.0
    %251 = vmatpush2.msra.mxu0 0.0
    %252 = vmatprep.subr.mxu0 0.0
    %253 = vmatpush2.msra.mxu0 0.0
    %254 = vmatprep.subr.mxu0 0.0
    %255 = vmatpush2.msra.mxu0 0.0
    %256 = vmatprep.subr.mxu0 0.0
    %257 = vmatpush2.msra.mxu0 0.0
    %258 = vmatprep.subr.mxu0 0.0
    %259 = vmatpush2.msra.mxu0 0.0
    %260 = vmatprep.subr.mxu0 0.0
    %261 = vmatpush2.msra.mxu0 0.0
    %262 = vmatprep.subr.mxu0 0.0
    %263 = vmatpush2.msra.mxu0 0.0
    %264 = vmatprep.subr.mxu0 0.0
    %265 = vmatpush2.msra.mxu0 0.0
    %266 = vmatprep.subr.mxu0 0.0
    %267 = vmatpush2.msra.mxu0 0.0
    %268 = vmatprep.subr.mxu0 0.0
    %269 = vmatpush2.msra.mxu0 0.0
    %270 = vmatprep.subr.mxu0 0.0
    %271 = vmatpush2.msra.mxu0 0.0
    %272 = vmatprep.subr.mxu0 0.0
    %273 = vmatpush2.msra.mxu0 0.0
    %274 = vmatprep.subr.mxu0 0.0
    %275 = vmatpush2.msra.mxu0 0.0
    %276 = vmatprep.subr.mxu0 0.0
    %277 = vmatpush2.msra.mxu0 0.0
    %278 = vmatprep.subr.mxu0 0.0
    %279 = vmatpush2.msra.mxu0 0.0
    %280 = vmatprep.subr.mxu0 0.0
    %281 = vmatpush2.msra.mxu0 0.0
    %282 = vmatprep.mubr.f32.mxu0 0.0
    %283 = vmatmul.mubr.f32.gmra.mxu0 %v191
    %v284 = vpop.f32.mrf.mxu0
    %v285 = vadd.f32 %v216, %v284
    %v286 = vpop.f32.mrf.mxu0
    %287 = vmatprep.mubr.f32.mxu0 0.0
    %288 = vmatmul.mubr.f32.gmra.mxu0 %v192
    %v289 = vpop.f32.mrf.mxu0
    %v290 = vadd.f32 %v216, %v289
    %v291 = vpop.f32.mrf.mxu0
    %292 = vmatprep.mubr.f32.mxu0 0.0
    %293 = vmatmul.mubr.f32.gmra.mxu0 %v193
    %v294 = vpop.f32.mrf.mxu0
    %v295 = vadd.f32 %v216, %v294
    %v296 = vpop.f32.mrf.mxu0
    %297 = vmatprep.mubr.f32.mxu0 0.0
    %298 = vmatmul.mubr.f32.gmra.mxu0 %v194
    %v299 = vpop.f32.mrf.mxu0
    %v300 = vadd.f32 %v216, %v299
    %v301 = vpop.f32.mrf.mxu0
    %302 = vdwg.mxu0
    %v303 = vmax.f32 %v285, 0.0
    %v304 = vmax.f32 %v290, 0.0
    %v305 = vmax.f32 %v295, 0.0
    %v306 = vmax.f32 %v300, 0.0
    %v307 = vld [vmem:[#allocation6] sm:$0xff]
    %v308 = vld [vmem:[#allocation6 + $0x8] sm:$0xff]
    %v309 = vld [vmem:[#allocation6 + $0x10] sm:$0xff]
    %v310 = vld [vmem:[#allocation6 + $0x18] sm:$0xff]
    %v311 = vld [vmem:[#allocation6 + $0x20] sm:$0xff]
    %v312 = vld [vmem:[#allocation6 + $0x28] sm:$0xff]
    %v313 = vld [vmem:[#allocation6 + $0x30] sm:$0xff]
    %v314 = vld [vmem:[#allocation6 + $0x38] sm:$0xff]
    %v315 = vld [vmem:[#allocation6 + $0x40] sm:$0xff]
    %v316 = vld [vmem:[#allocation6 + $0x48] sm:$0xff]
    %v317 = vld [vmem:[#allocation6 + $0x50] sm:$0xff]
    %v318 = vld [vmem:[#allocation6 + $0x58] sm:$0xff]
    %v319 = vld [vmem:[#allocation6 + $0x60] sm:$0xff]
    %v320 = vld [vmem:[#allocation6 + $0x68] sm:$0xff]
    %v321 = vld [vmem:[#allocation6 + $0x70] sm:$0xff]
    %v322 = vld [vmem:[#allocation6 + $0x78] sm:$0xff]
    %v323 = vld [vmem:[%s6] sm:$0x1]
    %v325 = vlaneseq
    %v326 = vshrl.u32 %v325, 7
    %v327 = vsub.s32 0, %v326
    %v328 = vrot.slane %v323, %v327
    %330 = vmatprep.subr.mxu0 0.0
    %331 = vmatpush1.msra.mxu0 %v322
    %332 = vmatprep.subr.mxu0 0.0
    %333 = vmatpush1.msra.mxu0 %v321
    %334 = vmatprep.subr.mxu0 0.0
    %335 = vmatpush1.msra.mxu0 %v320
    %336 = vmatprep.subr.mxu0 0.0
    %337 = vmatpush1.msra.mxu0 %v319
    %338 = vmatprep.subr.mxu0 0.0
    %339 = vmatpush1.msra.mxu0 %v318
    %340 = vmatprep.subr.mxu0 0.0
    %341 = vmatpush1.msra.mxu0 %v317
    %342 = vmatprep.subr.mxu0 0.0
    %343 = vmatpush1.msra.mxu0 %v316
    %344 = vmatprep.subr.mxu0 0.0
    %345 = vmatpush1.msra.mxu0 %v315
    %346 = vmatprep.subr.mxu0 0.0
    %347 = vmatpush1.msra.mxu0 %v314
    %348 = vmatprep.subr.mxu0 0.0
    %349 = vmatpush1.msra.mxu0 %v313
    %350 = vmatprep.subr.mxu0 0.0
    %351 = vmatpush1.msra.mxu0 %v312
    %352 = vmatprep.subr.mxu0 0.0
    %353 = vmatpush1.msra.mxu0 %v311
    %354 = vmatprep.subr.mxu0 0.0
    %355 = vmatpush1.msra.mxu0 %v310
    %356 = vmatprep.subr.mxu0 0.0
    %357 = vmatpush1.msra.mxu0 %v309
    %358 = vmatprep.subr.mxu0 0.0
    %359 = vmatpush1.msra.mxu0 %v308
    %360 = vmatprep.subr.mxu0 0.0
    %361 = vmatpush1.msra.mxu0 %v307
    %362 = vmatprep.subr.mxu0 0.0
    %363 = vmatpush2.msra.mxu0 0.0
    %364 = vmatprep.subr.mxu0 0.0
    %365 = vmatpush2.msra.mxu0 0.0
    %366 = vmatprep.subr.mxu0 0.0
    %367 = vmatpush2.msra.mxu0 0.0
    %368 = vmatprep.subr.mxu0 0.0
    %369 = vmatpush2.msra.mxu0 0.0
    %370 = vmatprep.subr.mxu0 0.0
    %371 = vmatpush2.msra.mxu0 0.0
    %372 = vmatprep.subr.mxu0 0.0
    %373 = vmatpush2.msra.mxu0 0.0
    %374 = vmatprep.subr.mxu0 0.0
    %375 = vmatpush2.msra.mxu0 0.0
    %376 = vmatprep.subr.mxu0 0.0
    %377 = vmatpush2.msra.mxu0 0.0
    %378 = vmatprep.subr.mxu0 0.0
    %379 = vmatpush2.msra.mxu0 0.0
    %380 = vmatprep.subr.mxu0 0.0
    %381 = vmatpush2.msra.mxu0 0.0
    %382 = vmatprep.subr.mxu0 0.0
    %383 = vmatpush2.msra.mxu0 0.0
    %384 = vmatprep.subr.mxu0 0.0
    %385 = vmatpush2.msra.mxu0 0.0
    %386 = vmatprep.subr.mxu0 0.0
    %387 = vmatpush2.msra.mxu0 0.0
    %388 = vmatprep.subr.mxu0 0.0
    %389 = vmatpush2.msra.mxu0 0.0
    %390 = vmatprep.subr.mxu0 0.0
    %391 = vmatpush2.msra.mxu0 0.0
    %392 = vmatprep.subr.mxu0 0.0
    %393 = vmatpush2.msra.mxu0 0.0
    %394 = vmatprep.mubr.f32.mxu0 0.0
    %395 = vmatmul.mubr.f32.gmra.mxu0 %v303
    %v396 = vpop.f32.mrf.mxu0
    %v397 = vadd.f32 %v328, %v396
    %v398 = vpop.f32.mrf.mxu0
    %399 = vmatprep.mubr.f32.mxu0 0.0
    %400 = vmatmul.mubr.f32.gmra.mxu0 %v304
    %v401 = vpop.f32.mrf.mxu0
    %v402 = vadd.f32 %v328, %v401
    %v403 = vpop.f32.mrf.mxu0
    %404 = vmatprep.mubr.f32.mxu0 0.0
    %405 = vmatmul.mubr.f32.gmra.mxu0 %v305
    %v406 = vpop.f32.mrf.mxu0
    %v407 = vadd.f32 %v328, %v406
    %v408 = vpop.f32.mrf.mxu0
    %409 = vmatprep.mubr.f32.mxu0 0.0
    %410 = vmatmul.mubr.f32.gmra.mxu0 %v306
    %v411 = vpop.f32.mrf.mxu0
    %v412 = vadd.f32 %v328, %v411
    %v413 = vpop.f32.mrf.mxu0
    %414 = vdwg.mxu0
    %v415 = vmax.f32 %v397, 0.0
    %v416 = vmax.f32 %v402, 0.0
    %v417 = vmax.f32 %v407, 0.0
    %v418 = vmax.f32 %v412, 0.0
    %v419 = vld [vmem:[#allocation8] sm:$0xff]
    %v420 = vld [vmem:[#allocation8 + $0x8] sm:$0xff]
    %v421 = vld [vmem:[#allocation8 + $0x10] sm:$0xff]
    %v422 = vld [vmem:[#allocation8 + $0x18] sm:$0xff]
    %v423 = vld [vmem:[#allocation8 + $0x20] sm:$0xff]
    %v424 = vld [vmem:[#allocation8 + $0x28] sm:$0xff]
    %v425 = vld [vmem:[#allocation8 + $0x30] sm:$0xff]
    %v426 = vld [vmem:[#allocation8 + $0x38] sm:$0xff]
    %v427 = vld [vmem:[#allocation8 + $0x40] sm:$0xff]
    %v428 = vld [vmem:[#allocation8 + $0x48] sm:$0xff]
    %v429 = vld [vmem:[#allocation8 + $0x50] sm:$0xff]
    %v430 = vld [vmem:[#allocation8 + $0x58] sm:$0xff]
    %v431 = vld [vmem:[#allocation8 + $0x60] sm:$0xff]
    %v432 = vld [vmem:[#allocation8 + $0x68] sm:$0xff]
    %v433 = vld [vmem:[#allocation8 + $0x70] sm:$0xff]
    %v434 = vld [vmem:[#allocation8 + $0x78] sm:$0xff]
    %435 = vmatprep.subr.mxu0 0.0
    %436 = vmatpush1.msra.mxu0 %v434
    %437 = vmatprep.subr.mxu0 0.0
    %438 = vmatpush1.msra.mxu0 %v433
    %439 = vmatprep.subr.mxu0 0.0
    %440 = vmatpush1.msra.mxu0 %v432
    %441 = vmatprep.subr.mxu0 0.0
    %442 = vmatpush1.msra.mxu0 %v431
    %443 = vmatprep.subr.mxu0 0.0
    %444 = vmatpush1.msra.mxu0 %v430
    %445 = vmatprep.subr.mxu0 0.0
    %446 = vmatpush1.msra.mxu0 %v429
    %447 = vmatprep.subr.mxu0 0.0
    %448 = vmatpush1.msra.mxu0 %v428
    %449 = vmatprep.subr.mxu0 0.0
    %450 = vmatpush1.msra.mxu0 %v427
    %451 = vmatprep.subr.mxu0 0.0
    %452 = vmatpush1.msra.mxu0 %v426
    %453 = vmatprep.subr.mxu0 0.0
    %454 = vmatpush1.msra.mxu0 %v425
    %455 = vmatprep.subr.mxu0 0.0
    %456 = vmatpush1.msra.mxu0 %v424
    %457 = vmatprep.subr.mxu0 0.0
    %458 = vmatpush1.msra.mxu0 %v423
    %459 = vmatprep.subr.mxu0 0.0
    %460 = vmatpush1.msra.mxu0 %v422
    %461 = vmatprep.subr.mxu0 0.0
    %462 = vmatpush1.msra.mxu0 %v421
    %463 = vmatprep.subr.mxu0 0.0
    %464 = vmatpush1.msra.mxu0 %v420
    %465 = vmatprep.subr.mxu0 0.0
    %466 = vmatpush1.msra.mxu0 %v419
    %467 = vmatprep.subr.mxu0 0.0
    %468 = vmatpush2.msra.mxu0 0.0
    %469 = vmatprep.subr.mxu0 0.0
    %470 = vmatpush2.msra.mxu0 0.0
    %471 = vmatprep.subr.mxu0 0.0
    %472 = vmatpush2.msra.mxu0 0.0
    %473 = vmatprep.subr.mxu0 0.0
    %474 = vmatpush2.msra.mxu0 0.0
    %475 = vmatprep.subr.mxu0 0.0
    %476 = vmatpush2.msra.mxu0 0.0
    %477 = vmatprep.subr.mxu0 0.0
    %478 = vmatpush2.msra.mxu0 0.0
    %479 = vmatprep.subr.mxu0 0.0
    %480 = vmatpush2.msra.mxu0 0.0
    %481 = vmatprep.subr.mxu0 0.0
    %482 = vmatpush2.msra.mxu0 0.0
    %483 = vmatprep.subr.mxu0 0.0
    %484 = vmatpush2.msra.mxu0 0.0
    %485 = vmatprep.subr.mxu0 0.0
    %486 = vmatpush2.msra.mxu0 0.0
    %487 = vmatprep.subr.mxu0 0.0
    %488 = vmatpush2.msra.mxu0 0.0
    %489 = vmatprep.subr.mxu0 0.0
    %490 = vmatpush2.msra.mxu0 0.0
    %491 = vmatprep.subr.mxu0 0.0
    %492 = vmatpush2.msra.mxu0 0.0
    %493 = vmatprep.subr.mxu0 0.0
    %494 = vmatpush2.msra.mxu0 0.0
    %495 = vmatprep.subr.mxu0 0.0
    %496 = vmatpush2.msra.mxu0 0.0
    %497 = vmatprep.subr.mxu0 0.0
    %498 = vmatpush2.msra.mxu0 0.0
    %499 = vmatprep.mubr.f32.mxu0 0.0
    %500 = vmatmul.mubr.f32.gmra.mxu0 %v415
    %v501 = vpop.f32.mrf.mxu0
    %v502 = vadd.f32 0.0, %v501
    %v503 = vpop.f32.mrf.mxu0
    %504 = vmatprep.mubr.f32.mxu0 0.0
    %505 = vmatmul.mubr.f32.gmra.mxu0 %v416
    %v506 = vpop.f32.mrf.mxu0
    %v507 = vadd.f32 0.0, %v506
    %v508 = vpop.f32.mrf.mxu0
    %509 = vmatprep.mubr.f32.mxu0 0.0
    %510 = vmatmul.mubr.f32.gmra.mxu0 %v417
    %v511 = vpop.f32.mrf.mxu0
    %v512 = vadd.f32 0.0, %v511
    %v513 = vpop.f32.mrf.mxu0
    %514 = vmatprep.mubr.f32.mxu0 0.0
    %515 = vmatmul.mubr.f32.gmra.mxu0 %v418
    %v516 = vpop.f32.mrf.mxu0
    %v517 = vadd.f32 0.0, %v516
    %v518 = vpop.f32.mrf.mxu0
    %519 = vdwg.mxu0
    %v520 = vmax.f32 %v502, %v507
    %v521 = vmax.f32 %v512, %v517
    %v522 = vmax.f32 %v520, %v521
    %v523 = vld [vmem:[#allocation2] sm:$0xff]
    %v524 = vmax.f32 %v523, %v522
    %525 = vst [vmem:[#allocation2] sm:$0xff] %v524
    // Predicated region
    $region78: #{tpu_custom_call.1} parent=1 // pred_check
      %p526 = pneg %p113
    $region79: #{tpu_custom_call.1} parent=1 // pred_check_branch
      %528 = sbr.rel (%p526) target = $region81
    $region80: #{tpu_custom_call.1} parent=1 // pred_region
      %v529 = vld [vmem:[#allocation2] sm:$0xff]
      %530 = vrot.lane.b32.xlu0 %v529, 64
      %v531 = vpop.permute.xlu0 %530
      %v532 = vmax.f32 %v529, %v531
      %v533 = vld [vmem:[%s8] sm:$0x1]
      %v535 = vlaneseq
      %v536 = vshrl.u32 %v535, 7
      %v537 = vsub.s32 0, %v536
      %v538 = vrot.slane %v533, %v537
      %v540 = vadd.f32 %v532, %v538
      %v541 = vld [vmem:[#allocation9] sm:$0xff]
      %v542 = vld [vmem:[#allocation9 + $0x8] sm:$0xff]
      %v543 = vld [vmem:[#allocation9 + $0x10] sm:$0xff]
      %v544 = vld [vmem:[#allocation9 + $0x18] sm:$0xff]
      %v545 = vld [vmem:[#allocation9 + $0x20] sm:$0xff]
      %v546 = vld [vmem:[#allocation9 + $0x28] sm:$0xff]
      %v547 = vld [vmem:[#allocation9 + $0x30] sm:$0xff]
      %v548 = vld [vmem:[#allocation9 + $0x38] sm:$0xff]
      %v549 = vld [vmem:[%s10] sm:$0x1]
      %v551 = vlaneseq
      %v552 = vshrl.u32 %v551, 7
      %v553 = vsub.s32 0, %v552
      %v554 = vrot.slane %v549, %v553
      %vm556 = vcmask 523264
      %v558 = vsel %vm556, %v540, 0
      %560 = vmatprep.subr.mxu0 0.0
      %561 = vmatpush1.msra.mxu0 0.0
      %562 = vmatprep.subr.mxu0 0.0
      %563 = vmatpush1.msra.mxu0 0.0
      %564 = vmatprep.subr.mxu0 0.0
      %565 = vmatpush1.msra.mxu0 0.0
      %566 = vmatprep.subr.mxu0 0.0
      %567 = vmatpush1.msra.mxu0 0.0
      %568 = vmatprep.subr.mxu0 0.0
      %569 = vmatpush1.msra.mxu0 0.0
      %570 = vmatprep.subr.mxu0 0.0
      %571 = vmatpush1.msra.mxu0 0.0
      %572 = vmatprep.subr.mxu0 0.0
      %573 = vmatpush1.msra.mxu0 0.0
      %574 = vmatprep.subr.mxu0 0.0
      %575 = vmatpush1.msra.mxu0 0.0
      %576 = vmatprep.subr.mxu0 0.0
      %577 = vmatpush1.msra.mxu0 %v548
      %578 = vmatprep.subr.mxu0 0.0
      %579 = vmatpush1.msra.mxu0 %v547
      %580 = vmatprep.subr.mxu0 0.0
      %581 = vmatpush1.msra.mxu0 %v546
      %582 = vmatprep.subr.mxu0 0.0
      %583 = vmatpush1.msra.mxu0 %v545
      %584 = vmatprep.subr.mxu0 0.0
      %585 = vmatpush1.msra.mxu0 %v544
      %586 = vmatprep.subr.mxu0 0.0
      %587 = vmatpush1.msra.mxu0 %v543
      %588 = vmatprep.subr.mxu0 0.0
      %589 = vmatpush1.msra.mxu0 %v542
      %590 = vmatprep.subr.mxu0 0.0
      %591 = vmatpush1.msra.mxu0 %v541
      %592 = vmatprep.subr.mxu0 0.0
      %593 = vmatpush2.msra.mxu0 0.0
      %594 = vmatprep.subr.mxu0 0.0
      %595 = vmatpush2.msra.mxu0 0.0
      %596 = vmatprep.subr.mxu0 0.0
      %597 = vmatpush2.msra.mxu0 0.0
      %598 = vmatprep.subr.mxu0 0.0
      %599 = vmatpush2.msra.mxu0 0.0
      %600 = vmatprep.subr.mxu0 0.0
      %601 = vmatpush2.msra.mxu0 0.0
      %602 = vmatprep.subr.mxu0 0.0
      %603 = vmatpush2.msra.mxu0 0.0
      %604 = vmatprep.subr.mxu0 0.0
      %605 = vmatpush2.msra.mxu0 0.0
      %606 = vmatprep.subr.mxu0 0.0
      %607 = vmatpush2.msra.mxu0 0.0
      %608 = vmatprep.subr.mxu0 0.0
      %609 = vmatpush2.msra.mxu0 0.0
      %610 = vmatprep.subr.mxu0 0.0
      %611 = vmatpush2.msra.mxu0 0.0
      %612 = vmatprep.subr.mxu0 0.0
      %613 = vmatpush2.msra.mxu0 0.0
      %614 = vmatprep.subr.mxu0 0.0
      %615 = vmatpush2.msra.mxu0 0.0
      %616 = vmatprep.subr.mxu0 0.0
      %617 = vmatpush2.msra.mxu0 0.0
      %618 = vmatprep.subr.mxu0 0.0
      %619 = vmatpush2.msra.mxu0 0.0
      %620 = vmatprep.subr.mxu0 0.0
      %621 = vmatpush2.msra.mxu0 0.0
      %622 = vmatprep.subr.mxu0 0.0
      %623 = vmatpush2.msra.mxu0 0.0
      %624 = vmatprep.mubr.f32.mxu0 0.0
      %625 = vmatmul.mubr.f32.gmra.mxu0 %v558
      %v626 = vpop.f32.mrf.mxu0
      %v627 = vadd.f32 %v554, %v626
      %v628 = vpop.f32.mrf.mxu0
      %629 = vdwg.mxu0
      %v630 = vmax.f32 %v627, 0.0
      %v631 = vld [vmem:[#allocation11] sm:$0xff]
      %v632 = vld [vmem:[#allocation11 + $0x8] sm:$0xff]
      %v633 = vld [vmem:[#allocation11 + $0x10] sm:$0xff]
      %v634 = vld [vmem:[#allocation11 + $0x18] sm:$0xff]
      %v635 = vld [vmem:[#allocation11 + $0x20] sm:$0xff]
      %v636 = vld [vmem:[#allocation11 + $0x28] sm:$0xff]
      %v637 = vld [vmem:[#allocation11 + $0x30] sm:$0xff]
      %v638 = vld [vmem:[#allocation11 + $0x38] sm:$0xff]
      %v639 = vld [vmem:[%s12] sm:$0x1]
      %v641 = vlaneseq
      %v642 = vshrl.u32 %v641, 7
      %v643 = vsub.s32 0, %v642
      %v644 = vrot.slane %v639, %v643
      %v647 = vsel %vm556, %v630, 0
      %649 = vmatprep.subr.mxu0 0.0
      %650 = vmatpush1.msra.mxu0 0.0
      %651 = vmatprep.subr.mxu0 0.0
      %652 = vmatpush1.msra.mxu0 0.0
      %653 = vmatprep.subr.mxu0 0.0
      %654 = vmatpush1.msra.mxu0 0.0
      %655 = vmatprep.subr.mxu0 0.0
      %656 = vmatpush1.msra.mxu0 0.0
      %657 = vmatprep.subr.mxu0 0.0
      %658 = vmatpush1.msra.mxu0 0.0
      %659 = vmatprep.subr.mxu0 0.0
      %660 = vmatpush1.msra.mxu0 0.0
      %661 = vmatprep.subr.mxu0 0.0
      %662 = vmatpush1.msra.mxu0 0.0
      %663 = vmatprep.subr.mxu0 0.0
      %664 = vmatpush1.msra.mxu0 0.0
      %665 = vmatprep.subr.mxu0 0.0
      %666 = vmatpush1.msra.mxu0 %v638
      %667 = vmatprep.subr.mxu0 0.0
      %668 = vmatpush1.msra.mxu0 %v637
      %669 = vmatprep.subr.mxu0 0.0
      %670 = vmatpush1.msra.mxu0 %v636
      %671 = vmatprep.subr.mxu0 0.0
      %672 = vmatpush1.msra.mxu0 %v635
      %673 = vmatprep.subr.mxu0 0.0
      %674 = vmatpush1.msra.mxu0 %v634
      %675 = vmatprep.subr.mxu0 0.0
      %676 = vmatpush1.msra.mxu0 %v633
      %677 = vmatprep.subr.mxu0 0.0
      %678 = vmatpush1.msra.mxu0 %v632
      %679 = vmatprep.subr.mxu0 0.0
      %680 = vmatpush1.msra.mxu0 %v631
      %681 = vmatprep.subr.mxu0 0.0
      %682 = vmatpush2.msra.mxu0 0.0
      %683 = vmatprep.subr.mxu0 0.0
      %684 = vmatpush2.msra.mxu0 0.0
      %685 = vmatprep.subr.mxu0 0.0
      %686 = vmatpush2.msra.mxu0 0.0
      %687 = vmatprep.subr.mxu0 0.0
      %688 = vmatpush2.msra.mxu0 0.0
      %689 = vmatprep.subr.mxu0 0.0
      %690 = vmatpush2.msra.mxu0 0.0
      %691 = vmatprep.subr.mxu0 0.0
      %692 = vmatpush2.msra.mxu0 0.0
      %693 = vmatprep.subr.mxu0 0.0
      %694 = vmatpush2.msra.mxu0 0.0
      %695 = vmatprep.subr.mxu0 0.0
      %696 = vmatpush2.msra.mxu0 0.0
      %697 = vmatprep.subr.mxu0 0.0
      %698 = vmatpush2.msra.mxu0 0.0
      %699 = vmatprep.subr.mxu0 0.0
      %700 = vmatpush2.msra.mxu0 0.0
      %701 = vmatprep.subr.mxu0 0.0
      %702 = vmatpush2.msra.mxu0 0.0
      %703 = vmatprep.subr.mxu0 0.0
      %704 = vmatpush2.msra.mxu0 0.0
      %705 = vmatprep.subr.mxu0 0.0
      %706 = vmatpush2.msra.mxu0 0.0
      %707 = vmatprep.subr.mxu0 0.0
      %708 = vmatpush2.msra.mxu0 0.0
      %709 = vmatprep.subr.mxu0 0.0
      %710 = vmatpush2.msra.mxu0 0.0
      %711 = vmatprep.subr.mxu0 0.0
      %712 = vmatpush2.msra.mxu0 0.0
      %713 = vmatprep.mubr.f32.mxu0 0.0
      %714 = vmatmul.mubr.f32.gmra.mxu0 %v647
      %v715 = vpop.f32.mrf.mxu0
      %v716 = vadd.f32 %v644, %v715
      %v717 = vpop.f32.mrf.mxu0
      %718 = vdwg.mxu0
      %719 = vst [vmem:[#allocation12] sm:$0xff] %v716
    $region81: #{tpu_custom_call.1} parent=1 // pred_fallthru
      _
    // Predicated region
    $region82: #{tpu_custom_call.1} parent=1 // pred_check
      _
    $region83: #{tpu_custom_call.1} parent=1 // pred_check_branch
      %721 = sbr.rel (0) target = $region85
    $region84: #{tpu_custom_call.1} parent=1 // pred_region
      %s723 = ssub.s32 128, 128
      %724 = vsyncadd [#allocation5], %s723
      %s726 = sshll.u32 [#allocation12], 4
      %s727 = int_to_ptr.vmem [resolvable:$true] %s726
      %729 = dma.vmem_to_hbm [thread:$0]  %s727, 128, %s13, [#allocation5]
    $region85: #{tpu_custom_call.1} parent=1 // pred_fallthru
      _
    // Predicated region
    $region86: #{tpu_custom_call.1} parent=1 // pred_check
      _
    $region87: #{tpu_custom_call.1} parent=1 // pred_check_branch
      %731 = sbr.rel (0) target = $region89
    $region88: #{tpu_custom_call.1} parent=1 // pred_region
      %732 = dma.done [#allocation5], 128
    $region89: #{tpu_custom_call.1} parent=1 // pred_fallthru
      _
    %733 = vsyncpa [#allocation4], 1
    %734 = vsyncpa [#allocation7], 1
    %735 = vsyncpa [#allocation10], 1
    %736 = vsyncpa [#allocation5], 1

</llo_original>
